<compile_context>
chip_gen: v5e
topology: v5e:2x2
jax: 0.10.0
libtpu: 0.0.40
codegen_flags: <defaults>
</compile_context>

<pallas_src>
import jax
import jax.numpy as jnp
from jax.experimental import pallas as pl
from jax.experimental.pallas import tpu as pltpu

INTRA_DECODER = True  # mirrors config.intra_decoder


# ---------------------------------------------------------------------------
# Single decode step (matches decoder_attention.forward), grid over batch.
# ---------------------------------------------------------------------------
def _attn_step_kernel(s_ref, prev_ref, wp_ref, ws_ref, bs_ref, v_ref, ct_ref):
    prev = prev_ref[...]                                      # (T, H)
    s_t = s_ref[...]                                          # (1, H)

    # et = W_prev(prev_s) ; dec_fea = W_s(s_t) + b            (MXU, f32 acc)
    et = jnp.dot(prev, wp_ref[...], preferred_element_type=jnp.float32)
    dec = jnp.dot(s_t, ws_ref[...], preferred_element_type=jnp.float32) + bs_ref[...]
    et = jnp.tanh(et + dec)                                   # (T, H)

    # scores = <et, v> : VPU multiply + lane reduce (no N=1 MXU matmul)
    scores = jnp.sum(et * v_ref[...], axis=1, keepdims=True)  # (T, 1)

    # softmax over the T previous decoder states
    m = jnp.max(scores, axis=0, keepdims=True)
    e = jnp.exp(scores - m)
    at = e / jnp.sum(e, axis=0, keepdims=True)                # (T, 1)

    # ct = sum_t at[t] * prev_s[t]
    ct = jnp.sum(at * prev.astype(jnp.float32), axis=0, keepdims=True)  # (1, H)
    ct_ref[...] = ct.astype(ct_ref.dtype)


def _attn_pallas(s_t, prev_s, Wp, Ws, bs, v):
    B, H = s_t.shape
    T = prev_s.shape[1]

    # Wrapper-side layout plumbing (free): unit dims + row-vector params.
    s3 = s_t.reshape(B, 1, H)
    bs2 = bs.reshape(1, H)
    v_row = v.reshape(1, H)

    ct3 = pl.pallas_call(
        _attn_step_kernel,
        out_shape=jax.ShapeDtypeStruct((B, 1, H), jnp.float32),
        grid=(B,),
        in_specs=[
            pl.BlockSpec((None, 1, H), lambda b: (b, 0, 0)),   # s_t      (per-b)
            pl.BlockSpec((None, T, H), lambda b: (b, 0, 0)),   # prev_s   (per-b)
            pl.BlockSpec((H, H), lambda b: (0, 0)),            # W_prev.T (resident)
            pl.BlockSpec((H, H), lambda b: (0, 0)),            # W_s.T    (resident)
            pl.BlockSpec((1, H), lambda b: (0, 0)),            # bias     (resident)
            pl.BlockSpec((1, H), lambda b: (0, 0)),            # v row    (resident)
        ],
        out_specs=pl.BlockSpec((None, 1, H), lambda b: (b, 0, 0)),
        compiler_params=pltpu.CompilerParams(
            dimension_semantics=("parallel",)),
    )(s3, prev_s, Wp, Ws, bs2, v_row)

    return ct3.reshape(B, H).astype(s_t.dtype)


def decoder_attention_forward(s_t, prev_s, Wp, Ws, bs, v,
                              intra_decoder=INTRA_DECODER):
    """Matches decoder_attention.forward(s_t, prev_s)."""
    if not intra_decoder:
        return jnp.zeros_like(s_t), prev_s
    if prev_s is None:
        return jnp.zeros_like(s_t), s_t[:, None, :]
    ct = _attn_pallas(s_t, prev_s, Wp, Ws, bs, v)
    # Caller-side append (no pass-through copy of prev_s inside the kernel).
    new_prev = jnp.concatenate([prev_s, s_t[:, None, :]], axis=1)
    return ct, new_prev


# ---------------------------------------------------------------------------
# Fused decode loop: S steps in one pallas_call, weights + state cache
# resident in VMEM.  Equivalent to calling forward() step-by-step starting
# from prev_s=None with the decoder states s_seq[:, t, :].
# ---------------------------------------------------------------------------
def _fused_decode_kernel(s_ref, wp_ref, ws_ref, bs_ref, v_ref, ct_ref, cache):
    i = pl.program_id(1)            # decode step within current batch element
    S = cache.shape[0]
    s_t = s_ref[...]                # (1, H) current decoder state

    @pl.when(i == 0)
    def _first_step():
        cache[...] = jnp.zeros_like(cache)        # clear stale scratch rows
        ct_ref[...] = jnp.zeros_like(ct_ref)      # ct_0 = 0 (prev_s was None)

    @pl.when(i > 0)
    def _attend():
        prev = cache[...]                          # (S, H); rows >= i are zero
        et = jnp.dot(prev, wp_ref[...], preferred_element_type=jnp.float32)
        dec = jnp.dot(s_t, ws_ref[...],
                      preferred_element_type=jnp.float32) + bs_ref[...]
        et = jnp.tanh(et + dec)                                     # (S, H)
        scores = jnp.sum(et * v_ref[...], axis=1, keepdims=True)    # (S, 1)
        row = jax.lax.broadcasted_iota(jnp.int32, (S, 1), 0)
        scores = jnp.where(row < i, scores, -jnp.inf)               # mask future
        m = jnp.max(scores, axis=0, keepdims=True)
        e = jnp.exp(scores - m)
        at = e / jnp.sum(e, axis=0, keepdims=True)                  # (S, 1)
        ct_ref[...] = jnp.sum(at * prev, axis=0,
                              keepdims=True).astype(ct_ref.dtype)

    # Append the current state: write only the new row of the resident cache.
    row = jax.lax.broadcasted_iota(jnp.int32, cache.shape, 0)
    cache[...] = jnp.where(row == i, s_t.astype(cache.dtype), cache[...])


def fused_decode_attention(s_seq, Wp, Ws, bs, v):
    """Run the whole intra-decoder attention loop (prev_s starts as None)."""
    B, S, H = s_seq.shape
    s4 = s_seq.reshape(B, S, 1, H)
    bs2 = bs.reshape(1, H)
    v_row = v.reshape(1, H)

    ct4 = pl.pallas_call(
        _fused_decode_kernel,
        out_shape=jax.ShapeDtypeStruct((B, S, 1, H), jnp.float32),
        grid=(B, S),
        in_specs=[
            pl.BlockSpec((None, None, 1, H), lambda b, i: (b, i, 0, 0)),  # s_t
            pl.BlockSpec((H, H), lambda b, i: (0, 0)),                     # W_prev.T
            pl.BlockSpec((H, H), lambda b, i: (0, 0)),                     # W_s.T
            pl.BlockSpec((1, H), lambda b, i: (0, 0)),                     # bias
            pl.BlockSpec((1, H), lambda b, i: (0, 0)),                     # v row
        ],
        out_specs=pl.BlockSpec((None, None, 1, H), lambda b, i: (b, i, 0, 0)),
        scratch_shapes=[pltpu.VMEM((S, H), jnp.float32)],   # resident prev_s cache
        compiler_params=pltpu.CompilerParams(
            dimension_semantics=("parallel", "arbitrary")),
    )(s4, Wp, Ws, bs2, v_row)

    ct_seq = ct4.reshape(B, S, H).astype(s_seq.dtype)
    final_prev = s_seq  # starting from prev_s=None, the cache ends as s_seq
    return ct_seq, final_prev


# ---------------------------------------------------------------------------
# Pure-JAX references.
# ---------------------------------------------------------------------------
def _reference(s_t, prev_s, Wp, Ws, bs, v):
    et = prev_s @ Wp                                      # (B, T, H)
    dec_fea = (s_t @ Ws + bs)[:, None, :]                 # (B, 1, H)
    et = jnp.tanh(et + dec_fea)
    scores = jnp.squeeze(et @ v, axis=2)                  # (B, T)
    at = jax.nn.softmax(scores, axis=1)
    ct = jnp.einsum('bt,bth->bh', at, prev_s)
    new_prev = jnp.concatenate([prev_s, s_t[:, None, :]], axis=1)
    return ct, new_prev


def _loop_reference(s_seq, Wp, Ws, bs, v):
    B, S, H = s_seq.shape
    prev = None
    cts = []
    for t in range(S):
        s_t = s_seq[:, t, :]
        if prev is None:
            cts.append(jnp.zeros((B, H), s_seq.dtype))
            prev = s_t[:, None, :]
        else:
            ct, prev = _reference(s_t, prev, Wp, Ws, bs, v)
            cts.append(ct)
    return jnp.stack(cts, axis=1), prev


if __name__ == "__main__":
    B, T, H = 2, 8, 32  # batch, previous decoder steps, hidden_dim
    key = jax.random.PRNGKey(0)
    k1, k2, k3, k4, k5, k6 = jax.random.split(key, 6)

    s_t = jax.random.normal(k1, (B, H), jnp.float32)
    prev_s = jax.random.normal(k2, (B, T, H), jnp.float32)

    # Deterministic parameter init (nn.Linear shapes), stored as (in, out).
    Wp = 0.1 * jax.random.normal(k3, (H, H), jnp.float32)   # W_prev.weight.T
    Ws = 0.1 * jax.random.normal(k4, (H, H), jnp.float32)   # W_s.weight.T
    bs = 0.1 * jax.random.normal(k5, (H,), jnp.float32)     # W_s.bias
    v = 0.1 * jax.random.normal(k6, (H, 1), jnp.float32)    # v.weight.T

    # --- single step (module forward semantics) ---------------------------
    ct_d, new_prev_s = decoder_attention_forward(s_t, prev_s, Wp, Ws, bs, v)
    jax.block_until_ready((ct_d, new_prev_s))

    ct_ref, prev_ref = _reference(s_t, prev_s, Wp, Ws, bs, v)
    assert ct_d.shape == (B, H) and new_prev_s.shape == (B, T + 1, H)
    assert jnp.allclose(ct_d, ct_ref, atol=1e-5, rtol=1e-5)
    assert jnp.allclose(new_prev_s, prev_ref, atol=1e-6, rtol=1e-6)

    # prev_s=None branch (pure-JAX glue, as in the module)
    ct0, prev0 = decoder_attention_forward(s_t, None, Wp, Ws, bs, v)
    jax.block_until_ready((ct0, prev0))
    assert jnp.all(ct0 == 0) and prev0.shape == (B, 1, H)

    # --- fused full decode loop (launch-amortized path) --------------------
    S = T  # run T decode steps in one kernel launch
    s_seq = jax.random.normal(jax.random.PRNGKey(1), (B, S, H), jnp.float32)
    ct_seq, final_prev = fused_decode_attention(s_seq, Wp, Ws, bs, v)
    jax.block_until_ready((ct_seq, final_prev))

    ct_seq_ref, final_prev_ref = _loop_reference(s_seq, Wp, Ws, bs, v)
    assert ct_seq.shape == (B, S, H)
    assert jnp.allclose(ct_seq, ct_seq_ref, atol=1e-5, rtol=1e-5)
    assert jnp.allclose(final_prev, final_prev_ref, atol=1e-6, rtol=1e-6)

    print("KERNEL_OK")
</pallas_src>

<mosaic_0001>
module attributes {stable_mosaic.version = 11 : i64} {
  func.func @_attn_step_kernel(%arg0: i32, %arg1: memref<1x1x32xf32, #tpu.memory_space<vmem>>, %arg2: memref<1x8x32xf32, #tpu.memory_space<vmem>>, %arg3: memref<32x32xf32, #tpu.memory_space<vmem>>, %arg4: memref<32x32xf32, #tpu.memory_space<vmem>>, %arg5: memref<1x32xf32, #tpu.memory_space<vmem>>, %arg6: memref<1x32xf32, #tpu.memory_space<vmem>>, %arg7: memref<1x1x32xf32, #tpu.memory_space<vmem>>) attributes {dimension_semantics = [#tpu.dimension_semantics<parallel>], iteration_bounds = array<i64: 2>, scalar_prefetch = 0 : i64, scratch_operands = 0 : i64, tpu.core_type = #tpu.core_type<tc>, window_params = [{transform_indices = @transform_0, window_bounds = array<i64: 1, 1, 32>}, {transform_indices = @transform_1, window_bounds = array<i64: 1, 8, 32>}, {pipeline_mode = #tpu.pipeline_mode<synchronous>, transform_indices = @transform_2, window_bounds = array<i64: 32, 32>}, {pipeline_mode = #tpu.pipeline_mode<synchronous>, transform_indices = @transform_3, window_bounds = array<i64: 32, 32>}, {pipeline_mode = #tpu.pipeline_mode<synchronous>, transform_indices = @transform_4, window_bounds = array<i64: 1, 32>}, {pipeline_mode = #tpu.pipeline_mode<synchronous>, transform_indices = @transform_5, window_bounds = array<i64: 1, 32>}, {transform_indices = @transform_6, window_bounds = array<i64: 1, 1, 32>}]} {
    %c0 = arith.constant 0 : index
    %c0_0 = arith.constant 0 : index
    %c0_1 = arith.constant 0 : index
    %0 = vector.load %arg2[%c0, %c0_0, %c0_1] : memref<1x8x32xf32, #tpu.memory_space<vmem>>, vector<1x8x32xf32>
    %1 = vector.shape_cast %0 : vector<1x8x32xf32> to vector<8x32xf32>
    %c0_2 = arith.constant 0 : index
    %c0_3 = arith.constant 0 : index
    %c0_4 = arith.constant 0 : index
    %2 = vector.load %arg1[%c0_2, %c0_3, %c0_4] : memref<1x1x32xf32, #tpu.memory_space<vmem>>, vector<1x1x32xf32>
    %3 = vector.shape_cast %2 : vector<1x1x32xf32> to vector<1x32xf32>
    %c0_5 = arith.constant 0 : index
    %c0_6 = arith.constant 0 : index
    %4 = vector.load %arg3[%c0_5, %c0_6] : memref<32x32xf32, #tpu.memory_space<vmem>>, vector<32x32xf32>
    %cst = arith.constant dense<0.000000e+00> : vector<8x32xf32>
    %5 = tpu.matmul %1, %4, %cst {dimension_numbers = #tpu.dot_dimension_numbers<[1], [0], [0], [1], [0, 0, 1, 1], [], []>} : vector<8x32xf32>, vector<32x32xf32>, vector<8x32xf32> -> vector<8x32xf32>
    %c0_7 = arith.constant 0 : index
    %c0_8 = arith.constant 0 : index
    %6 = vector.load %arg4[%c0_7, %c0_8] : memref<32x32xf32, #tpu.memory_space<vmem>>, vector<32x32xf32>
    %cst_9 = arith.constant dense<0.000000e+00> : vector<1x32xf32>
    %7 = tpu.matmul %3, %6, %cst_9 {dimension_numbers = #tpu.dot_dimension_numbers<[1], [0], [0], [1], [0, 0, 1, 1], [], []>} : vector<1x32xf32>, vector<32x32xf32>, vector<1x32xf32> -> vector<1x32xf32>
    %c0_10 = arith.constant 0 : index
    %c0_11 = arith.constant 0 : index
    %8 = vector.load %arg5[%c0_10, %c0_11] : memref<1x32xf32, #tpu.memory_space<vmem>>, vector<1x32xf32>
    %9 = arith.addf %7, %8 : vector<1x32xf32>
    %10 = vector.broadcast %9 : vector<1x32xf32> to vector<8x32xf32>
    %11 = arith.addf %5, %10 : vector<8x32xf32>
    %12 = math.tanh %11 : vector<8x32xf32>
    %c0_12 = arith.constant 0 : index
    %c0_13 = arith.constant 0 : index
    %13 = vector.load %arg6[%c0_12, %c0_13] : memref<1x32xf32, #tpu.memory_space<vmem>>, vector<1x32xf32>
    %14 = vector.broadcast %13 : vector<1x32xf32> to vector<8x32xf32>
    %15 = arith.mulf %12, %14 : vector<8x32xf32>
    %cst_14 = arith.constant dense<0.000000e+00> : vector<8xf32>
    %16 = vector.multi_reduction <add>, %15, %cst_14 [1] : vector<8x32xf32> to vector<8xf32>
    %17 = vector.shape_cast %16 : vector<8xf32> to vector<8x1xf32>
    %cst_15 = arith.constant dense<0xFF800000> : vector<1xf32>
    %18 = vector.multi_reduction <maximumf>, %17, %cst_15 [0] : vector<8x1xf32> to vector<1xf32>
    %19 = vector.shape_cast %18 : vector<1xf32> to vector<1x1xf32>
    %20 = vector.broadcast %19 : vector<1x1xf32> to vector<8x1xf32>
    %21 = arith.subf %17, %20 : vector<8x1xf32>
    %22 = math.exp %21 : vector<8x1xf32>
    %cst_16 = arith.constant dense<0.000000e+00> : vector<1xf32>
    %23 = vector.multi_reduction <add>, %22, %cst_16 [0] : vector<8x1xf32> to vector<1xf32>
    %24 = vector.shape_cast %23 : vector<1xf32> to vector<1x1xf32>
    %25 = vector.broadcast %24 : vector<1x1xf32> to vector<8x1xf32>
    %26 = arith.divf %22, %25 : vector<8x1xf32>
    %27 = vector.broadcast %26 : vector<8x1xf32> to vector<8x32xf32>
    %28 = arith.mulf %27, %1 : vector<8x32xf32>
    %cst_17 = arith.constant dense<0.000000e+00> : vector<32xf32>
    %29 = vector.multi_reduction <add>, %28, %cst_17 [0] : vector<8x32xf32> to vector<32xf32>
    %30 = vector.shape_cast %29 : vector<32xf32> to vector<1x32xf32>
    %c0_18 = arith.constant 0 : index
    %c0_19 = arith.constant 0 : index
    %c0_20 = arith.constant 0 : index
    %31 = vector.load %arg7[%c0_18, %c0_19, %c0_20] : memref<1x1x32xf32, #tpu.memory_space<vmem>>, vector<1x1x32xf32>
    %32 = vector.shape_cast %31 : vector<1x1x32xf32> to vector<1x32xf32>
    %33 = vector.shape_cast %30 : vector<1x32xf32> to vector<1x1x32xf32>
    tpu.vector_store %arg7[%c0_18, %c0_19, %c0_20], %33 {strides = array<i32>} : memref<1x1x32xf32, #tpu.memory_space<vmem>>, vector<1x1x32xf32>,
    return
  }
  func.func @transform_0(%arg0: i32) -> (i32, i32, i32) {
    %c0_i32 = arith.constant 0 : i32
    %c0_i32_0 = arith.constant 0 : i32
    %c0_i32_1 = arith.constant 0 : i32
    return %arg0, %c0_i32, %c0_i32_0 : i32, i32, i32
  }
  func.func @transform_1(%arg0: i32) -> (i32, i32, i32) {
    %c0_i32 = arith.constant 0 : i32
    %c0_i32_0 = arith.constant 0 : i32
    %c0_i32_1 = arith.constant 0 : i32
    return %arg0, %c0_i32, %c0_i32_0 : i32, i32, i32
  }
  func.func @transform_2(%arg0: i32) -> (i32, i32) {
    %c0_i32 = arith.constant 0 : i32
    %c0_i32_0 = arith.constant 0 : i32
    %c0_i32_1 = arith.constant 0 : i32
    return %c0_i32, %c0_i32_0 : i32, i32
  }
  func.func @transform_3(%arg0: i32) -> (i32, i32) {
    %c0_i32 = arith.constant 0 : i32
    %c0_i32_0 = arith.constant 0 : i32
    %c0_i32_1 = arith.constant 0 : i32
    return %c0_i32, %c0_i32_0 : i32, i32
  }
  func.func @transform_4(%arg0: i32) -> (i32, i32) {
    %c0_i32 = arith.constant 0 : i32
    %c0_i32_0 = arith.constant 0 : i32
    %c0_i32_1 = arith.constant 0 : i32
    return %c0_i32, %c0_i32_0 : i32, i32
  }
  func.func @transform_5(%arg0: i32) -> (i32, i32) {
    %c0_i32 = arith.constant 0 : i32
    %c0_i32_0 = arith.constant 0 : i32
    %c0_i32_1 = arith.constant 0 : i32
    return %c0_i32, %c0_i32_0 : i32, i32
  }
  func.func @transform_6(%arg0: i32) -> (i32, i32, i32) {
    %c0_i32 = arith.constant 0 : i32
    %c0_i32_0 = arith.constant 0 : i32
    %c0_i32_1 = arith.constant 0 : i32
    return %arg0, %c0_i32, %c0_i32_0 : i32, i32, i32
  }
}

</mosaic_0001>

<llo_original>
// kernel: tpu_custom_call.1
$region0: #{tpu_custom_call.1}
  #allocation0 [shape = 'u32[]', space=smem, size = 0x4, offset = 0x4, fixed_abs, tag = 'smem constant byte address 0x4 - core index']
  #allocation1 [shape = 'u32[72,128]{1,0:T(1,128)}', space=vmem, size = 0x9000, scoped, tag = 'internal scratch']
  %s0 = inlined_call_operand.hbm [shape: f32[2,1,32], index: 0, kind: input, shape index: {}]
  %s1 = inlined_call_operand.hbm [shape: f32[2,8,32], index: 1, kind: input, shape index: {}]
  %s2 = inlined_call_operand.hbm [shape: f32[32,32], index: 2, kind: input, shape index: {}]
  %s3 = inlined_call_operand.hbm [shape: f32[32,32], index: 3, kind: input, shape index: {}]
  %s4 = inlined_call_operand.vmem [shape: f32[1,32], index: 4, kind: input, shape index: {}]
  %s5 = inlined_call_operand.vmem [shape: f32[1,32], index: 5, kind: input, shape index: {}]
  %s6 = inlined_call_operand.hbm [shape: f32[2,1,32], index: 6, kind: output, shape index: {}]
  %s7 = sld [smem:[#allocation0]]
  $region73: #{tpu_custom_call.1} parent=0
    _
  %s9 = ssub.s32 1, %s7
  %s10 = scalar_select 0, %s9, %s7
  $region1: #{tpu_custom_call.1} parent=0
    #allocation2 [shape = 'u8[1024]{0}', space=vmem, size = 0x400, scoped, tag = 'input window, operand 0']
    #allocation3 [shape = 's32[2]{0}', space=sflag, size = 0x8, scoped, tag = 'scoped memory for tpu_custom_call.1']
    #allocation4 [shape = 's32[2]{0}', space=sflag, size = 0x8, scoped, tag = 'scoped memory for tpu_custom_call.1']
    #allocation5 [shape = 'u8[8192]{0}', space=vmem, size = 0x2000, scoped, tag = 'input window, operand 1']
    #allocation6 [shape = 's32[2]{0}', space=sflag, size = 0x8, scoped, tag = 'scoped memory for tpu_custom_call.1']
    #allocation7 [shape = 'u8[16384]{0}', space=vmem, size = 0x4000, scoped, tag = 'input window, operand 2, single buffered']
    #allocation8 [shape = 'u8[16384]{0}', space=vmem, size = 0x4000, scoped, tag = 'input window, operand 3, single buffered']
    #allocation9 [shape = 's32[1]{0}', space=sflag, size = 0x4, scoped, tag = 'scoped memory for tpu_custom_call.1']
    #allocation10 [shape = 'u8[1024]{0}', space=vmem, size = 0x400, scoped, tag = 'output window, operand 0']
    %11 = vsyncpa [#allocation3], 0
    %s12 = scalar_lea.sflag [#allocation3], 1
    %13 = vsyncpa %s12, 0
    %14 = vsyncpa [#allocation6], 0
    %s15 = scalar_lea.sflag [#allocation6], 1
    %16 = vsyncpa %s15, 0
    %17 = vsyncpa [#allocation9], 0
    %18 = vsyncpa [#allocation4], 0
    %s19 = scalar_lea.sflag [#allocation4], 1
    %20 = vsyncpa %s19, 0
    loop: start=0, step=1, limit=4
    $region2: #{tpu_custom_call.1} parent=1 // loop_pre_header
      _
    $region3: #{tpu_custom_call.1} parent=1 // loop_header
      %s22 = sphi 0, %s26
      %p23 = scmp.ge.s32.totalorder %s22, 4
      %s32 = sphi 0, %s34
      %s35 = sphi 0, %s32
      %s36 = sphi 0, %s35
      %s52 = sphi 0, %s36
      %s58 = sphi 0, %s60
      %s61 = sphi 0, %s58
      %s62 = sphi 0, %s61
      %s78 = sphi 0, %s62
      %s82 = sphi 0, %s82
      %s84 = sphi 0, %s82
      %s85 = sphi 0, %s84
      %s99 = sphi 0, %s85
      %s103 = sphi 0, %s103
      %s105 = sphi 0, %s103
      %s106 = sphi 0, %s105
      %s120 = sphi 0, %s106
      %s124 = sphi 0, %s124
      %s126 = sphi 0, %s124
      %s127 = sphi 0, %s126
      %s141 = sphi 0, %s127
      %s145 = sphi 0, %s145
      %s147 = sphi 0, %s145
      %s148 = sphi 0, %s147
      %s162 = sphi 0, %s148
      %s168 = sphi 0, %s170
      %s171 = sphi 0, %s168
      %s172 = sphi 0, %s171
      %s188 = sphi 0, %s172
    $region4: #{tpu_custom_call.1} parent=1 // loop_header_branch
      %25 = sbr.rel (%p23) target = $region8
    $region5: #{tpu_custom_call.1} parent=1 // loop_body
      %s27 = ssub.s32 %s22, 1
      %s28 = ssub.s32 %s22, 2
      %s29 = sadd.s32 %s22, 1
      %s30 = ssub.s32 %s22, %s29
      %p31 = scmp.eq.s32.totalorder %s30, 0
      %s33 = sadd.s32 %s32, 1
      %s34 = scalar_select %p31, %s32, %s33
      %p37 = pneg %p31
      %p38 = scmp.eq.s32.totalorder %s22, 1
      %p39 = por %p37, %p38
      %p40 = scmp.ne.s32.totalorder %s32, %s35
      %p41 = scmp.eq.s32.totalorder %s22, 0
      %p42 = por %p40, %p41
      %p43 = scmp.ne.s32.totalorder %s32, %s35
      %p44 = scmp.eq.s32.totalorder %s27, 1
      %p45 = por %p43, %p44
      %p46 = scmp.ne.s32.totalorder %s35, %s36
      %p47 = scmp.eq.s32.totalorder %s27, 0
      %p48 = por %p46, %p47
      %p49 = scmp.ne.s32.totalorder %s35, %s36
      %p50 = scmp.eq.s32.totalorder %s28, 1
      %p51 = por %p49, %p50
      %p53 = scmp.ne.s32.totalorder %s36, %s52
      %p54 = scmp.eq.s32.totalorder %s28, 0
      %p55 = por %p53, %p54
      %s56 = ssub.s32 %s22, %s29
      %p57 = scmp.eq.s32.totalorder %s56, 0
      %s59 = sadd.s32 %s58, 1
      %s60 = scalar_select %p57, %s58, %s59
      %p63 = pneg %p57
      %p64 = scmp.eq.s32.totalorder %s22, 1
      %p65 = por %p63, %p64
      %p66 = scmp.ne.s32.totalorder %s58, %s61
      %p67 = scmp.eq.s32.totalorder %s22, 0
      %p68 = por %p66, %p67
      %p69 = scmp.ne.s32.totalorder %s58, %s61
      %p70 = scmp.eq.s32.totalorder %s27, 1
      %p71 = por %p69, %p70
      %p72 = scmp.ne.s32.totalorder %s61, %s62
      %p73 = scmp.eq.s32.totalorder %s27, 0
      %p74 = por %p72, %p73
      %p75 = scmp.ne.s32.totalorder %s61, %s62
      %p76 = scmp.eq.s32.totalorder %s28, 1
      %p77 = por %p75, %p76
      %p79 = scmp.ne.s32.totalorder %s62, %s78
      %p80 = scmp.eq.s32.totalorder %s28, 0
      %p81 = por %p79, %p80
      %s83 = sadd.s32 %s82, 1
      %p86 = scmp.eq.s32.totalorder %s22, 1
      %p87 = scmp.ne.s32.totalorder %s82, %s84
      %p88 = scmp.eq.s32.totalorder %s22, 0
      %p89 = por %p87, %p88
      %p90 = scmp.ne.s32.totalorder %s82, %s84
      %p91 = scmp.eq.s32.totalorder %s27, 1
      %p92 = por %p90, %p91
      %p93 = scmp.ne.s32.totalorder %s84, %s85
      %p94 = scmp.eq.s32.totalorder %s27, 0
      %p95 = por %p93, %p94
      %p96 = scmp.ne.s32.totalorder %s84, %s85
      %p97 = scmp.eq.s32.totalorder %s28, 1
      %p98 = por %p96, %p97
      %p100 = scmp.ne.s32.totalorder %s85, %s99
      %p101 = scmp.eq.s32.totalorder %s28, 0
      %p102 = por %p100, %p101
      %s104 = sadd.s32 %s103, 1
      %p107 = scmp.eq.s32.totalorder %s22, 1
      %p108 = scmp.ne.s32.totalorder %s103, %s105
      %p109 = scmp.eq.s32.totalorder %s22, 0
      %p110 = por %p108, %p109
      %p111 = scmp.ne.s32.totalorder %s103, %s105
      %p112 = scmp.eq.s32.totalorder %s27, 1
      %p113 = por %p111, %p112
      %p114 = scmp.ne.s32.totalorder %s105, %s106
      %p115 = scmp.eq.s32.totalorder %s27, 0
      %p116 = por %p114, %p115
      %p117 = scmp.ne.s32.totalorder %s105, %s106
      %p118 = scmp.eq.s32.totalorder %s28, 1
      %p119 = por %p117, %p118
      %p121 = scmp.ne.s32.totalorder %s106, %s120
      %p122 = scmp.eq.s32.totalorder %s28, 0
      %p123 = por %p121, %p122
      %s125 = sadd.s32 %s124, 1
      %p128 = scmp.eq.s32.totalorder %s22, 1
      %p129 = scmp.ne.s32.totalorder %s124, %s126
      %p130 = scmp.eq.s32.totalorder %s22, 0
      %p131 = por %p129, %p130
      %p132 = scmp.ne.s32.totalorder %s124, %s126
      %p133 = scmp.eq.s32.totalorder %s27, 1
      %p134 = por %p132, %p133
      %p135 = scmp.ne.s32.totalorder %s126, %s127
      %p136 = scmp.eq.s32.totalorder %s27, 0
      %p137 = por %p135, %p136
      %p138 = scmp.ne.s32.totalorder %s126, %s127
      %p139 = scmp.eq.s32.totalorder %s28, 1
      %p140 = por %p138, %p139
      %p142 = scmp.ne.s32.totalorder %s127, %s141
      %p143 = scmp.eq.s32.totalorder %s28, 0
      %p144 = por %p142, %p143
      %s146 = sadd.s32 %s145, 1
      %p149 = scmp.eq.s32.totalorder %s22, 1
      %p150 = scmp.ne.s32.totalorder %s145, %s147
      %p151 = scmp.eq.s32.totalorder %s22, 0
      %p152 = por %p150, %p151
      %p153 = scmp.ne.s32.totalorder %s145, %s147
      %p154 = scmp.eq.s32.totalorder %s27, 1
      %p155 = por %p153, %p154
      %p156 = scmp.ne.s32.totalorder %s147, %s148
      %p157 = scmp.eq.s32.totalorder %s27, 0
      %p158 = por %p156, %p157
      %p159 = scmp.ne.s32.totalorder %s147, %s148
      %p160 = scmp.eq.s32.totalorder %s28, 1
      %p161 = por %p159, %p160
      %p163 = scmp.ne.s32.totalorder %s148, %s162
      %p164 = scmp.eq.s32.totalorder %s28, 0
      %p165 = por %p163, %p164
      %s166 = ssub.s32 %s22, %s29
      %p167 = scmp.eq.s32.totalorder %s166, 0
      %s169 = sadd.s32 %s168, 1
      %s170 = scalar_select %p167, %s168, %s169
      %p173 = pneg %p167
      %p174 = scmp.eq.s32.totalorder %s22, 1
      %p175 = por %p173, %p174
      %p176 = scmp.ne.s32.totalorder %s168, %s171
      %p177 = scmp.eq.s32.totalorder %s22, 0
      %p178 = por %p176, %p177
      %p179 = scmp.ne.s32.totalorder %s168, %s171
      %p180 = scmp.eq.s32.totalorder %s27, 1
      %p181 = por %p179, %p180
      %p182 = scmp.ne.s32.totalorder %s171, %s172
      %p183 = scmp.eq.s32.totalorder %s27, 0
      %p184 = por %p182, %p183
      %p185 = scmp.ne.s32.totalorder %s171, %s172
      %p186 = scmp.eq.s32.totalorder %s28, 1
      %p187 = por %p185, %p186
      %p189 = scmp.ne.s32.totalorder %s172, %s188
      %p190 = scmp.eq.s32.totalorder %s28, 0
      %p191 = por %p189, %p190
      %p192 = scmp.le.s32.totalorder 1, %s22
      %p193 = scmp.lt.s32.totalorder %s22, 3
      %p194 = pnand %p192, %p193
      %p195 = pneg %p194
      // Predicated region
      $region9: #{tpu_custom_call.1} parent=5 // pred_check
        _
      $region10: #{tpu_custom_call.1} parent=5 // pred_check_branch
        %197 = sbr.rel (%p194) target = $region12
      $region11: #{tpu_custom_call.1} parent=5 // pred_region
        %s198 = ssub.s32 %s22, 1
        // Predicated region
        $region13: #{tpu_custom_call.1} parent=11 // pred_check
          %p199 = pneg %p95
        $region14: #{tpu_custom_call.1} parent=11 // pred_check_branch
          %201 = sbr.rel (%p199) target = $region16
        $region15: #{tpu_custom_call.1} parent=11 // pred_region
          %203 = vsyncadd [#allocation6], 0
          %s204 = sshll.u32 %s2, 4
          %s205 = int_to_ptr.hbm [resolvable:$true] %s204
          %s206 = sshll.u32 [#allocation7], 4
          %s207 = int_to_ptr.vmem [resolvable:$true] %s206
          %212 = dma.hbm_to_vmem [thread:$0]  %s205, 512, %s207, [#allocation6], 128, 128, 8
        $region16: #{tpu_custom_call.1} parent=11 // pred_fallthru
          _
        // Predicated region
        $region17: #{tpu_custom_call.1} parent=11 // pred_check
          %p213 = pneg %p116
        $region18: #{tpu_custom_call.1} parent=11 // pred_check_branch
          %215 = sbr.rel (%p213) target = $region20
        $region19: #{tpu_custom_call.1} parent=11 // pred_region
          %217 = vsyncadd [#allocation9], 0
          %s218 = sshll.u32 %s3, 4
          %s219 = int_to_ptr.hbm [resolvable:$true] %s218
          %s220 = sshll.u32 [#allocation8], 4
          %s221 = int_to_ptr.vmem [resolvable:$true] %s220
          %226 = dma.hbm_to_vmem [thread:$0]  %s219, 512, %s221, [#allocation9], 128, 128, 8
        $region20: #{tpu_custom_call.1} parent=11 // pred_fallthru
          _
        // Predicated region
        $region21: #{tpu_custom_call.1} parent=11 // pred_check
          %p227 = pneg %p137
        $region22: #{tpu_custom_call.1} parent=11 // pred_check_branch
          %229 = sbr.rel (%p227) target = $region24
        $region23: #{tpu_custom_call.1} parent=11 // pred_region
          _
        $region24: #{tpu_custom_call.1} parent=11 // pred_fallthru
          _
        // Predicated region
        $region25: #{tpu_custom_call.1} parent=11 // pred_check
          %p230 = pneg %p158
        $region26: #{tpu_custom_call.1} parent=11 // pred_check_branch
          %232 = sbr.rel (%p230) target = $region28
        $region27: #{tpu_custom_call.1} parent=11 // pred_region
          _
        $region28: #{tpu_custom_call.1} parent=11 // pred_fallthru
          _
      $region12: #{tpu_custom_call.1} parent=5 // pred_fallthru
        _
      %p233 = scmp.lt.s32.totalorder %s22, 2
      // Predicated region
      $region29: #{tpu_custom_call.1} parent=5 // pred_check
        %p234 = pneg %p233
      $region30: #{tpu_custom_call.1} parent=5 // pred_check_branch
        %236 = sbr.rel (%p234) target = $region32
      $region31: #{tpu_custom_call.1} parent=5 // pred_region
        // Predicated region
        $region33: #{tpu_custom_call.1} parent=31 // pred_check
          %p237 = pneg %p42
        $region34: #{tpu_custom_call.1} parent=31 // pred_check_branch
          %239 = sbr.rel (%p237) target = $region36
        $region35: #{tpu_custom_call.1} parent=31 // pred_region
          %s240 = sand.u32 %s32, 1
          %s241 = scalar_lea.sflag [#allocation3], %s240
          %s242 = sand.u32 %s32, 1
          %s243 = scalar_lea.vmem [#allocation2], %s242
          %245 = vsyncadd %s241, 0
          %s246 = scalar_lea.hbm %s0, %s22
          %s248 = sshll.u32 %s246, 4
          %s249 = int_to_ptr.hbm [resolvable:$true] %s248
          %s250 = sshll.u32 %s243, 4
          %s251 = int_to_ptr.vmem [resolvable:$true] %s250
          %253 = dma.hbm_to_vmem [thread:$0]  %s249, 16, %s251, %s241
        $region36: #{tpu_custom_call.1} parent=31 // pred_fallthru
          _
        // Predicated region
        $region37: #{tpu_custom_call.1} parent=31 // pred_check
          %p254 = pneg %p68
        $region38: #{tpu_custom_call.1} parent=31 // pred_check_branch
          %256 = sbr.rel (%p254) target = $region40
        $region39: #{tpu_custom_call.1} parent=31 // pred_region
          %s257 = sand.u32 %s22, 1
          %s258 = scalar_lea.sflag [#allocation6], %s257
          %s259 = sand.u32 %s58, 1
          %s260 = smul.addr %s259, 8
          %s261 = scalar_lea.vmem [#allocation5], %s260
          %263 = vsyncadd %s258, 0
          %s264 = smul.addr %s22, 8
          %s265 = scalar_lea.hbm %s1, %s264
          %s267 = sshll.u32 %s265, 4
          %s268 = int_to_ptr.hbm [resolvable:$true] %s267
          %s269 = sshll.u32 %s261, 4
          %s270 = int_to_ptr.vmem [resolvable:$true] %s269
          %272 = dma.hbm_to_vmem [thread:$0]  %s268, 128, %s270, %s258
        $region40: #{tpu_custom_call.1} parent=31 // pred_fallthru
          _
      $region32: #{tpu_custom_call.1} parent=5 // pred_fallthru
        _
      %p273 = scmp.le.s32.totalorder 1, %s22
      %p274 = scmp.lt.s32.totalorder %s22, 3
      %p275 = pnand %p273, %p274
      %p276 = pneg %p275
      // Predicated region
      $region41: #{tpu_custom_call.1} parent=5 // pred_check
        _
      $region42: #{tpu_custom_call.1} parent=5 // pred_check_branch
        %278 = sbr.rel (%p275) target = $region44
      $region43: #{tpu_custom_call.1} parent=5 // pred_region
        %s279 = ssub.s32 %s22, 1
        %s280 = sand.u32 %s35, 1
        %s281 = scalar_lea.sflag [#allocation3], %s280
        %s282 = sand.u32 %s35, 1
        %s283 = scalar_lea.vmem [#allocation2], %s282
        // Predicated region
        $region45: #{tpu_custom_call.1} parent=43 // pred_check
          %p284 = pneg %p48
        $region46: #{tpu_custom_call.1} parent=43 // pred_check_branch
          %286 = sbr.rel (%p284) target = $region48
        $region47: #{tpu_custom_call.1} parent=43 // pred_region
          %288 = dma.done %s281, 16
        $region48: #{tpu_custom_call.1} parent=43 // pred_fallthru
          _
        %s289 = sand.u32 %s27, 1
        %s290 = scalar_lea.sflag [#allocation6], %s289
        %s291 = sand.u32 %s61, 1
        %s292 = smul.addr %s291, 8
        %s293 = scalar_lea.vmem [#allocation5], %s292
        // Predicated region
        $region49: #{tpu_custom_call.1} parent=43 // pred_check
          %p294 = pneg %p74
        $region50: #{tpu_custom_call.1} parent=43 // pred_check_branch
          %296 = sbr.rel (%p294) target = $region52
        $region51: #{tpu_custom_call.1} parent=43 // pred_region
          %298 = dma.done %s290, 128
        $region52: #{tpu_custom_call.1} parent=43 // pred_fallthru
          _
        // Predicated region
        $region53: #{tpu_custom_call.1} parent=43 // pred_check
          %p299 = pneg %p95
        $region54: #{tpu_custom_call.1} parent=43 // pred_check_branch
          %301 = sbr.rel (%p299) target = $region56
        $region55: #{tpu_custom_call.1} parent=43 // pred_region
          %303 = dma.done [#allocation6], 512
        $region56: #{tpu_custom_call.1} parent=43 // pred_fallthru
          _
        // Predicated region
        $region57: #{tpu_custom_call.1} parent=43 // pred_check
          %p304 = pneg %p116
        $region58: #{tpu_custom_call.1} parent=43 // pred_check_branch
          %306 = sbr.rel (%p304) target = $region60
        $region59: #{tpu_custom_call.1} parent=43 // pred_region
          %308 = dma.done [#allocation9], 512
        $region60: #{tpu_custom_call.1} parent=43 // pred_fallthru
          _
        %s309 = sand.u32 %s35, 1
        %s310 = scalar_lea.sflag [#allocation3], %s309
        %s311 = sand.u32 %s35, 1
        %s312 = scalar_lea.vmem [#allocation2], %s311
        %p313 = pneg %p48
        %p314 = pneg %p45
        %s315 = sand.u32 %s27, 1
        %s316 = scalar_lea.sflag [#allocation6], %s315
        %s317 = sand.u32 %s61, 1
        %s318 = smul.addr %s317, 8
        %s319 = scalar_lea.vmem [#allocation5], %s318
        %p320 = pneg %p74
        %p321 = pneg %p71
        %p322 = pneg %p95
        %p323 = pneg %p92
        %p324 = pneg %p116
        %p325 = pneg %p113
        %p326 = pneg %p137
        %p327 = pneg %p134
        %p328 = pneg %p158
        %p329 = pneg %p155
        %p330 = pneg %p184
        %p331 = pneg %p181
        %s332 = sand.u32 %s171, 1
        %s333 = scalar_lea.sflag [#allocation4], %s332
        %s334 = sand.u32 %s171, 1
        %s335 = scalar_lea.vmem [#allocation10], %s334
        %v336 = vld [vmem:[%s293] sm:$0xff]
        %v337 = vld [vmem:[%s283] sm:$0x1]
        %v338 = vld [vmem:[#allocation7] sm:$0xff]
        %v339 = vld [vmem:[#allocation7 + $0x8] sm:$0xff]
        %v340 = vld [vmem:[#allocation7 + $0x10] sm:$0xff]
        %v341 = vld [vmem:[#allocation7 + $0x18] sm:$0xff]
        %v342 = vld [vmem:[#allocation8] sm:$0xff]
        %v343 = vld [vmem:[#allocation8 + $0x8] sm:$0xff]
        %v344 = vld [vmem:[#allocation8 + $0x10] sm:$0xff]
        %v345 = vld [vmem:[#allocation8 + $0x18] sm:$0xff]
        %v346 = vld [vmem:[%s4] sm:$0x1]
        %vm347 = vcmask 261120
        %v349 = vsel %vm347, %v337, 0
        %351 = vmatpush.msra.mxu0 0.0
        %352 = vmatpush.msra.mxu0 0.0
        %353 = vmatpush.msra.mxu0 0.0
        %354 = vmatpush.msra.mxu0 0.0
        %355 = vmatpush.msra.mxu0 0.0
        %356 = vmatpush.msra.mxu0 0.0
        %357 = vmatpush.msra.mxu0 0.0
        %358 = vmatpush.msra.mxu0 0.0
        %359 = vmatpush.msra.mxu0 0.0
        %360 = vmatpush.msra.mxu0 0.0
        %361 = vmatpush.msra.mxu0 0.0
        %362 = vmatpush.msra.mxu0 0.0
        %363 = vmatpush.msra.mxu0 %v345
        %364 = vmatpush.msra.mxu0 %v344
        %365 = vmatpush.msra.mxu0 %v343
        %366 = vmatpush.msra.mxu0 %v342
        %367 = vmatmul.f32.gmra.mxu0 %v349
        %v368 = vpop.f32.mrf.mxu0
        %v369 = vadd.f32 %v346, %v368
        %370 = vdwg.mxu0
        %v371 = vperm.slane %v369, 0
        %v373 = vsel %vm347, %v336, 0
        %375 = vmatpush.msra.mxu0 0.0
        %376 = vmatpush.msra.mxu0 0.0
        %377 = vmatpush.msra.mxu0 0.0
        %378 = vmatpush.msra.mxu0 0.0
        %379 = vmatpush.msra.mxu0 0.0
        %380 = vmatpush.msra.mxu0 0.0
        %381 = vmatpush.msra.mxu0 0.0
        %382 = vmatpush.msra.mxu0 0.0
        %383 = vmatpush.msra.mxu0 0.0
        %384 = vmatpush.msra.mxu0 0.0
        %385 = vmatpush.msra.mxu0 0.0
        %386 = vmatpush.msra.mxu0 0.0
        %387 = vmatpush.msra.mxu0 %v341
        %388 = vmatpush.msra.mxu0 %v340
        %389 = vmatpush.msra.mxu0 %v339
        %390 = vmatpush.msra.mxu0 %v338
        %391 = vmatmul.f32.gmra.mxu0 %v373
        %v392 = vpop.f32.mrf.mxu0
        %v393 = vadd.f32 %v371, %v392
        %394 = vdwg.mxu0
        %v395 = vtanh.pop %v393
        %v396 = vld [vmem:[%s5] sm:$0x1]
        %v398 = vperm.slane %v396, 0
        %v400 = vmul.f32 %v395, %v398
        %v401 = vsel %vm347, %v400, 0.0
        %402 = vadd.xlane.f32.xlu0 %v401
        %v403 = vpop.xlane.xlu0 %402
        %v404 = vrot.slane %v403, 4
        %v405 = vmax.f32 %v403, %v404
        %v406 = vrot.slane %v405, 2
        %v407 = vmax.f32 %v405, %v406
        %v408 = vrot.slane %v407, 1
        %v409 = vmax.f32 %v407, %v408
        %v410 = vsub.f32 %v403, %v409
        %v411 = vmul.f32 %v410, 1.442695
        %v412 = vpow.pop %v411
        %v413 = vrot.slane %v412, 4
        %v414 = vadd.f32 %v412, %v413
        %v415 = vrot.slane %v414, 2
        %v416 = vadd.f32 %v414, %v415
        %v417 = vrot.slane %v416, 1
        %v418 = vadd.f32 %v416, %v417
        %v419 = vrcp.pop %v418
        %v420 = vmul.f32 %v418, %v419
        %v421 = vsub.f32 1.0, %v420
        %v422 = vmul.f32 %v419, %v421
        %v423 = vadd.f32 %v419, %v422
        %vm424 = vweird.f32 %v418
        %vm425 = vweird.f32 %v419
        %vm426 = vmor %vm424, %vm425
        %v427 = vsel %vm426, %v419, %v423
        %v428 = vand.u32 2147483647, %v418
        %vm429 = vcmp.eq.f32.partialorder %v428, 8.507059e+37
        %v430 = vand.u32 %v418, 2147483648
        %v431 = vor.u32 1.1754944e-38, %v430
        %v432 = vsel %vm429, %v431, %v427
        %v433 = vmul.f32 %v412, %v432
        %v434 = vmul.f32 %v433, %v336
        %v435 = vsel %vm347, %v434, 0.0
        %v436 = vrot.slane %v435, 4
        %v437 = vadd.f32 %v435, %v436
        %v438 = vrot.slane %v437, 2
        %v439 = vadd.f32 %v437, %v438
        %v440 = vrot.slane %v439, 1
        %v441 = vadd.f32 %v439, %v440
        %vm442 = vcmask 253952
        %443 = vst.msk [vmem:[%s335] sm:$0x1] %vm442, %v441
        %s444 = sand.u32 %s171, 1
        %s445 = scalar_lea.sflag [#allocation4], %s444
        %s446 = sand.u32 %s171, 1
        %s447 = scalar_lea.vmem [#allocation10], %s446
        // Predicated region
        $region61: #{tpu_custom_call.1} parent=43 // pred_check
          %p448 = pneg %p181
        $region62: #{tpu_custom_call.1} parent=43 // pred_check_branch
          %450 = sbr.rel (%p448) target = $region64
        $region63: #{tpu_custom_call.1} parent=43 // pred_region
          %452 = vsyncadd %s445, 0
          %s453 = scalar_lea.hbm %s6, %s27
          %s455 = sshll.u32 %s447, 4
          %s456 = int_to_ptr.vmem [resolvable:$true] %s455
          %s457 = sshll.u32 %s453, 4
          %s458 = int_to_ptr.hbm [resolvable:$true] %s457
          %460 = dma.vmem_to_hbm [thread:$0]  %s456, 16, %s458, %s445
        $region64: #{tpu_custom_call.1} parent=43 // pred_fallthru
          _
      $region44: #{tpu_custom_call.1} parent=5 // pred_fallthru
        _
      %p461 = scmp.le.s32.totalorder 2, %s22
      // Predicated region
      $region65: #{tpu_custom_call.1} parent=5 // pred_check
        %p462 = pneg %p461
      $region66: #{tpu_custom_call.1} parent=5 // pred_check_branch
        %464 = sbr.rel (%p462) target = $region68
      $region67: #{tpu_custom_call.1} parent=5 // pred_region
        %s465 = ssub.s32 %s22, 2
        // Predicated region
        $region69: #{tpu_custom_call.1} parent=67 // pred_check
          %p466 = pneg %p187
        $region70: #{tpu_custom_call.1} parent=67 // pred_check_branch
          %468 = sbr.rel (%p466) target = $region72
        $region71: #{tpu_custom_call.1} parent=67 // pred_region
          %s469 = sand.u32 %s172, 1
          %s470 = scalar_lea.sflag [#allocation4], %s469
          %s471 = sand.u32 %s172, 1
          %s472 = scalar_lea.vmem [#allocation10], %s471
          %474 = dma.done %s470, 16
        $region72: #{tpu_custom_call.1} parent=67 // pred_fallthru
          _
      $region68: #{tpu_custom_call.1} parent=5 // pred_fallthru
        _
    $region6: #{tpu_custom_call.1} parent=1 // loop_footer
      %s26 = sadd.s32 1, %s22
    $region7: #{tpu_custom_call.1} parent=1 // loop_footer_branch
      %21 = sbr.rel target = $region3
    $region8: #{tpu_custom_call.1} parent=1 // loop_exit
      _
    %475 = vsyncpa [#allocation3], 1
    %s476 = scalar_lea.sflag [#allocation3], 1
    %477 = vsyncpa %s476, 1
    %478 = vsyncpa [#allocation6], 1
    %s479 = scalar_lea.sflag [#allocation6], 1
    %480 = vsyncpa %s479, 1
    %481 = vsyncpa [#allocation9], 1
    %482 = vsyncpa [#allocation4], 1
    %s483 = scalar_lea.sflag [#allocation4], 1
    %484 = vsyncpa %s483, 1

</llo_original>
